<compile_context>
chip_gen: v5e
topology: v5e:2x2
jax: 0.10.0
libtpu: 0.0.40
codegen_flags: <defaults>
</compile_context>

<pallas_src>
import jax
import jax.numpy as jnp
from jax.experimental import pallas as pl
from jax.experimental.pallas import tpu as pltpu

# ----- "metadata" for the module (small, TPU-friendly sizes) -----
METADATA = {
    "generic_encoder_latent_dim": 16,
    "personalized_encoder_latent_dim": 16,
    "decoder_hidden_dim": 128,
    "image_width": 16,
    "image_height": 16,
    "num_channels": 1,
}

D_GEN = METADATA["generic_encoder_latent_dim"]
D_PER = METADATA["personalized_encoder_latent_dim"]
D_IN = D_GEN + D_PER                                   # 32
D_HID = METADATA["decoder_hidden_dim"]                 # 128
D_OUT = (
    METADATA["image_width"] * METADATA["image_height"] * METADATA["num_channels"]
)                                                      # 256


def _round_up(x, m):
    return ((x + m - 1) // m) * m


def _choose_tile_b(batch):
    """Pick a batch tile that amortizes grid-step overhead, divides the batch
    when possible (no pad / output-slice copy), gives >=2 tiles for mid/large
    batches (v7x megacore), and stays VMEM-safe on v5e/v6e/v7x."""
    b8 = _round_up(batch, 8)          # sublane multiple
    if b8 <= 256:
        return b8                     # tiny batch: single tile, pad at most 7 rows
    # Prefer the largest MXU-friendly tile that divides B exactly with >=2 tiles.
    for t in (2048, 1024, 512, 256):
        if batch % t == 0 and batch >= 2 * t:
            return t
    # Fallback: ~half the padded batch, multiple of 256, capped at 2048.
    return min(2048, _round_up(max(256, b8 // 2), 256))


def decoder_kernel(
    x_ref,    # (TILE_B, D_IN)   concatenated [g, p] latents
    w1_ref,   # (D_IN, D_HID)    bf16
    b1_ref,   # (1, D_HID)       f32
    w2_ref,   # (D_HID, D_HID)   bf16
    b2_ref,   # (1, D_HID)       f32
    w3_ref,   # (D_HID, D_OUT)   bf16
    b3_ref,   # (1, D_OUT)       f32
    o_ref,    # (TILE_B, D_OUT)
):
    cd = w1_ref.dtype  # matmul operand dtype (bf16); accumulation is f32

    x = x_ref[...].astype(cd)

    # Linear 1 + ReLU
    h1 = jnp.dot(x, w1_ref[...], preferred_element_type=jnp.float32) + b1_ref[...]
    h1 = jnp.maximum(h1, 0.0).astype(cd)

    # Linear 2 + ReLU
    h2 = jnp.dot(h1, w2_ref[...], preferred_element_type=jnp.float32) + b2_ref[...]
    h2 = jnp.maximum(h2, 0.0).astype(cd)

    # Linear 3 + Sigmoid.  sigmoid(x) == 0.5 * tanh(0.5 * x) + 0.5:
    # single EUP transcendental, no exp-overflow edge case.
    h3 = jnp.dot(h2, w3_ref[...], preferred_element_type=jnp.float32) + b3_ref[...]
    o_ref[...] = (0.5 * jnp.tanh(0.5 * h3) + 0.5).astype(o_ref.dtype)


def decoder_forward(g, p, params, *, tile_b=None, compute_dtype=jnp.bfloat16,
                    out_dtype=jnp.float32):
    """g: (B, D_GEN) f32, p: (B, D_PER) f32 -> (B, D_OUT) out_dtype."""
    B = g.shape[0]

    # Wrapper-side concat (trivial copy, dwarfed by the B x 1 KiB output write).
    x = jnp.concatenate([g, p], axis=1)          # (B, D_IN)

    if tile_b is None:
        tile_b = _choose_tile_b(B)
    n_tiles = pl.cdiv(B, tile_b)
    b_pad = n_tiles * tile_b
    if b_pad != B:
        x = jnp.pad(x, ((0, b_pad - B), (0, 0)))

    w1, b1, w2, b2, w3, b3 = params
    w1c = w1.astype(compute_dtype)
    w2c = w2.astype(compute_dtype)
    w3c = w3.astype(compute_dtype)

    batch_spec = lambda feat: pl.BlockSpec((tile_b, feat), lambda i: (i, 0))
    # Constant index_map: weights/biases DMA'd once, stay VMEM-resident.
    weight_spec = lambda shape: pl.BlockSpec(shape, lambda i: (0, 0))

    itemsize = jnp.dtype(compute_dtype).itemsize
    weight_bytes = (D_IN * D_HID + D_HID * D_HID + D_HID * D_OUT) * itemsize
    bias_bytes = (2 * D_HID + D_OUT) * 4
    io_bytes = b_pad * (D_IN * 4 + D_OUT * jnp.dtype(out_dtype).itemsize)
    cost = pl.CostEstimate(
        flops=2 * b_pad * (D_IN * D_HID + D_HID * D_HID + D_HID * D_OUT),
        transcendentals=b_pad * D_OUT,  # one tanh per output element
        bytes_accessed=weight_bytes + bias_bytes + io_bytes,
    )

    out = pl.pallas_call(
        decoder_kernel,
        out_shape=jax.ShapeDtypeStruct((b_pad, D_OUT), out_dtype),
        grid=(n_tiles,),
        in_specs=[
            batch_spec(D_IN),             # x = cat([g, p], 1)
            weight_spec((D_IN, D_HID)),   # W1
            weight_spec((1, D_HID)),      # b1
            weight_spec((D_HID, D_HID)),  # W2
            weight_spec((1, D_HID)),      # b2
            weight_spec((D_HID, D_OUT)),  # W3
            weight_spec((1, D_OUT)),      # b3
        ],
        out_specs=pl.BlockSpec((tile_b, D_OUT), lambda i: (i, 0)),
        compiler_params=pltpu.CompilerParams(
            # Batch tiles are independent -> shard across v7x's two TensorCores.
            dimension_semantics=("parallel",),
        ),
        cost_estimate=cost,
    )(x, w1c, b1, w2c, b2, w3c, b3)

    # With the divisor-preferring tile choice this slice is usually a no-op
    # (b_pad == B); it only materializes a copy for awkward batch sizes.
    return out if b_pad == B else out[:B]


def init_params(key):
    """Deterministic synthetic parameters (PyTorch nn.Linear-like init)."""
    ks = jax.random.split(key, 6)

    def linear(kw, kb, fan_in, fan_out):
        bound = 1.0 / jnp.sqrt(fan_in)
        # stored as (in, out) so the kernel computes x @ W
        w = jax.random.uniform(kw, (fan_in, fan_out), jnp.float32, -bound, bound)
        b = jax.random.uniform(kb, (1, fan_out), jnp.float32, -bound, bound)
        return w, b

    w1, b1 = linear(ks[0], ks[1], D_IN, D_HID)
    w2, b2 = linear(ks[2], ks[3], D_HID, D_HID)
    w3, b3 = linear(ks[4], ks[5], D_HID, D_OUT)
    return (w1, b1, w2, b2, w3, b3)


def reference_forward(g, p, params):
    """Pure-JAX f32 reference of the PyTorch forward."""
    w1, b1, w2, b2, w3, b3 = params
    x = jnp.concatenate([g, p], axis=1)
    h = jnp.maximum(x @ w1 + b1, 0.0)
    h = jnp.maximum(h @ w2 + b2, 0.0)
    return jax.nn.sigmoid(h @ w3 + b3)


if __name__ == "__main__":
    key = jax.random.PRNGKey(0)
    k_params, k_g, k_p = jax.random.split(key, 3)

    params = init_params(k_params)

    B = 8
    g = jax.random.normal(k_g, (B, D_GEN), jnp.float32)
    p = jax.random.normal(k_p, (B, D_PER), jnp.float32)

    out = decoder_forward(g, p, params)
    out = jax.block_until_ready(out)

    ref = reference_forward(g, p, params)
    assert out.shape == (B, D_OUT), out.shape
    # bf16 matmul operands (accepted accuracy trade-off) -> looser tolerance.
    max_err = float(jnp.max(jnp.abs(out - ref)))
    assert max_err < 5e-2, max_err

    print("KERNEL_OK")
</pallas_src>

<mosaic_0001>
module attributes {stable_mosaic.version = 11 : i64} {
  func.func @decoder_kernel(%arg0: i32, %arg1: memref<8x32xf32, #tpu.memory_space<vmem>>, %arg2: memref<32x128xbf16, #tpu.memory_space<vmem>>, %arg3: memref<1x128xf32, #tpu.memory_space<vmem>>, %arg4: memref<128x128xbf16, #tpu.memory_space<vmem>>, %arg5: memref<1x128xf32, #tpu.memory_space<vmem>>, %arg6: memref<128x256xbf16, #tpu.memory_space<vmem>>, %arg7: memref<1x256xf32, #tpu.memory_space<vmem>>, %arg8: memref<8x256xf32, #tpu.memory_space<vmem>>) attributes {dimension_semantics = [#tpu.dimension_semantics<parallel>], iteration_bounds = array<i64: 1>, scalar_prefetch = 0 : i64, scratch_operands = 0 : i64, tpu.core_type = #tpu.core_type<tc>, window_params = [{transform_indices = @transform_0, window_bounds = array<i64: 8, 32>}, {pipeline_mode = #tpu.pipeline_mode<synchronous>, transform_indices = @transform_1, window_bounds = array<i64: 32, 128>}, {pipeline_mode = #tpu.pipeline_mode<synchronous>, transform_indices = @transform_2, window_bounds = array<i64: 1, 128>}, {pipeline_mode = #tpu.pipeline_mode<synchronous>, transform_indices = @transform_3, window_bounds = array<i64: 128, 128>}, {pipeline_mode = #tpu.pipeline_mode<synchronous>, transform_indices = @transform_4, window_bounds = array<i64: 1, 128>}, {pipeline_mode = #tpu.pipeline_mode<synchronous>, transform_indices = @transform_5, window_bounds = array<i64: 128, 256>}, {pipeline_mode = #tpu.pipeline_mode<synchronous>, transform_indices = @transform_6, window_bounds = array<i64: 1, 256>}, {transform_indices = @transform_7, window_bounds = array<i64: 8, 256>}]} {
    %c0 = arith.constant 0 : index
    %c0_0 = arith.constant 0 : index
    %0 = vector.load %arg1[%c0, %c0_0] : memref<8x32xf32, #tpu.memory_space<vmem>>, vector<8x32xf32>
    %1 = arith.truncf %0 : vector<8x32xf32> to vector<8x32xbf16>
    %c0_1 = arith.constant 0 : index
    %c0_2 = arith.constant 0 : index
    %2 = vector.load %arg2[%c0_1, %c0_2] : memref<32x128xbf16, #tpu.memory_space<vmem>>, vector<32x128xbf16>
    %cst = arith.constant dense<0.000000e+00> : vector<8x128xf32>
    %3 = tpu.matmul %1, %2, %cst {dimension_numbers = #tpu.dot_dimension_numbers<[1], [0], [0], [1], [0, 0, 1, 1], [], []>} : vector<8x32xbf16>, vector<32x128xbf16>, vector<8x128xf32> -> vector<8x128xf32>
    %c0_3 = arith.constant 0 : index
    %c0_4 = arith.constant 0 : index
    %4 = vector.load %arg3[%c0_3, %c0_4] : memref<1x128xf32, #tpu.memory_space<vmem>>, vector<1x128xf32>
    %5 = vector.broadcast %4 : vector<1x128xf32> to vector<8x128xf32>
    %6 = arith.addf %3, %5 : vector<8x128xf32>
    %cst_5 = arith.constant 0.000000e+00 : f32
    %7 = vector.broadcast %cst_5 : f32 to vector<8x128xf32>
    %8 = arith.maximumf %6, %7 : vector<8x128xf32>
    %9 = arith.truncf %8 : vector<8x128xf32> to vector<8x128xbf16>
    %c0_6 = arith.constant 0 : index
    %c0_7 = arith.constant 0 : index
    %10 = vector.load %arg4[%c0_6, %c0_7] : memref<128x128xbf16, #tpu.memory_space<vmem>>, vector<128x128xbf16>
    %cst_8 = arith.constant dense<0.000000e+00> : vector<8x128xf32>
    %11 = tpu.matmul %9, %10, %cst_8 {dimension_numbers = #tpu.dot_dimension_numbers<[1], [0], [0], [1], [0, 0, 1, 1], [], []>} : vector<8x128xbf16>, vector<128x128xbf16>, vector<8x128xf32> -> vector<8x128xf32>
    %c0_9 = arith.constant 0 : index
    %c0_10 = arith.constant 0 : index
    %12 = vector.load %arg5[%c0_9, %c0_10] : memref<1x128xf32, #tpu.memory_space<vmem>>, vector<1x128xf32>
    %13 = vector.broadcast %12 : vector<1x128xf32> to vector<8x128xf32>
    %14 = arith.addf %11, %13 : vector<8x128xf32>
    %cst_11 = arith.constant 0.000000e+00 : f32
    %15 = vector.broadcast %cst_11 : f32 to vector<8x128xf32>
    %16 = arith.maximumf %14, %15 : vector<8x128xf32>
    %17 = arith.truncf %16 : vector<8x128xf32> to vector<8x128xbf16>
    %c0_12 = arith.constant 0 : index
    %c0_13 = arith.constant 0 : index
    %18 = vector.load %arg6[%c0_12, %c0_13] : memref<128x256xbf16, #tpu.memory_space<vmem>>, vector<128x256xbf16>
    %cst_14 = arith.constant dense<0.000000e+00> : vector<8x256xf32>
    %19 = tpu.matmul %17, %18, %cst_14 {dimension_numbers = #tpu.dot_dimension_numbers<[1], [0], [0], [1], [0, 0, 1, 1], [], []>} : vector<8x128xbf16>, vector<128x256xbf16>, vector<8x256xf32> -> vector<8x256xf32>
    %c0_15 = arith.constant 0 : index
    %c0_16 = arith.constant 0 : index
    %20 = vector.load %arg7[%c0_15, %c0_16] : memref<1x256xf32, #tpu.memory_space<vmem>>, vector<1x256xf32>
    %21 = vector.broadcast %20 : vector<1x256xf32> to vector<8x256xf32>
    %22 = arith.addf %19, %21 : vector<8x256xf32>
    %cst_17 = arith.constant 5.000000e-01 : f32
    %23 = vector.broadcast %cst_17 : f32 to vector<8x256xf32>
    %24 = arith.mulf %23, %22 : vector<8x256xf32>
    %25 = math.tanh %24 : vector<8x256xf32>
    %cst_18 = arith.constant 5.000000e-01 : f32
    %26 = vector.broadcast %cst_18 : f32 to vector<8x256xf32>
    %27 = arith.mulf %26, %25 : vector<8x256xf32>
    %cst_19 = arith.constant 5.000000e-01 : f32
    %28 = vector.broadcast %cst_19 : f32 to vector<8x256xf32>
    %29 = arith.addf %27, %28 : vector<8x256xf32>
    %c0_20 = arith.constant 0 : index
    %c0_21 = arith.constant 0 : index
    %30 = vector.load %arg8[%c0_20, %c0_21] : memref<8x256xf32, #tpu.memory_space<vmem>>, vector<8x256xf32>
    tpu.vector_store %arg8[%c0_20, %c0_21], %29 {strides = array<i32>} : memref<8x256xf32, #tpu.memory_space<vmem>>, vector<8x256xf32>,
    return
  }
  func.func @transform_0(%arg0: i32) -> (i32, i32) {
    %c0_i32 = arith.constant 0 : i32
    %c0_i32_0 = arith.constant 0 : i32
    return %arg0, %c0_i32 : i32, i32
  }
  func.func @transform_1(%arg0: i32) -> (i32, i32) {
    %c0_i32 = arith.constant 0 : i32
    %c0_i32_0 = arith.constant 0 : i32
    %c0_i32_1 = arith.constant 0 : i32
    return %c0_i32, %c0_i32_0 : i32, i32
  }
  func.func @transform_2(%arg0: i32) -> (i32, i32) {
    %c0_i32 = arith.constant 0 : i32
    %c0_i32_0 = arith.constant 0 : i32
    %c0_i32_1 = arith.constant 0 : i32
    return %c0_i32, %c0_i32_0 : i32, i32
  }
  func.func @transform_3(%arg0: i32) -> (i32, i32) {
    %c0_i32 = arith.constant 0 : i32
    %c0_i32_0 = arith.constant 0 : i32
    %c0_i32_1 = arith.constant 0 : i32
    return %c0_i32, %c0_i32_0 : i32, i32
  }
  func.func @transform_4(%arg0: i32) -> (i32, i32) {
    %c0_i32 = arith.constant 0 : i32
    %c0_i32_0 = arith.constant 0 : i32
    %c0_i32_1 = arith.constant 0 : i32
    return %c0_i32, %c0_i32_0 : i32, i32
  }
  func.func @transform_5(%arg0: i32) -> (i32, i32) {
    %c0_i32 = arith.constant 0 : i32
    %c0_i32_0 = arith.constant 0 : i32
    %c0_i32_1 = arith.constant 0 : i32
    return %c0_i32, %c0_i32_0 : i32, i32
  }
  func.func @transform_6(%arg0: i32) -> (i32, i32) {
    %c0_i32 = arith.constant 0 : i32
    %c0_i32_0 = arith.constant 0 : i32
    %c0_i32_1 = arith.constant 0 : i32
    return %c0_i32, %c0_i32_0 : i32, i32
  }
  func.func @transform_7(%arg0: i32) -> (i32, i32) {
    %c0_i32 = arith.constant 0 : i32
    %c0_i32_0 = arith.constant 0 : i32
    return %arg0, %c0_i32 : i32, i32
  }
}

</mosaic_0001>

<llo_original>
// kernel: tpu_custom_call.1
$region0: #{tpu_custom_call.1}
  #allocation0 [shape = 'u32[]', space=smem, size = 0x4, offset = 0x4, fixed_abs, tag = 'smem constant byte address 0x4 - core index']
  #allocation1 [shape = 'u32[72,128]{1,0:T(1,128)}', space=vmem, size = 0x9000, scoped, tag = 'internal scratch']
  %s0 = inlined_call_operand.hbm [shape: f32[8,32], index: 0, kind: input, shape index: {}]
  %s1 = inlined_call_operand.hbm [shape: bf16[32,128], index: 1, kind: input, shape index: {}]
  %s2 = inlined_call_operand.vmem [shape: f32[1,128], index: 2, kind: input, shape index: {}]
  %s3 = inlined_call_operand.hbm [shape: bf16[128,128], index: 3, kind: input, shape index: {}]
  %s4 = inlined_call_operand.hbm [shape: f32[1,128], index: 4, kind: input, shape index: {}]
  %s5 = inlined_call_operand.hbm [shape: bf16[128,256], index: 5, kind: input, shape index: {}]
  %s6 = inlined_call_operand.vmem [shape: f32[1,256], index: 6, kind: input, shape index: {}]
  %s7 = inlined_call_operand.hbm [shape: f32[8,256], index: 7, kind: output, shape index: {}]
  %s8 = sld [smem:[#allocation0]]
  $region58: #{tpu_custom_call.1} parent=0
    _
  %s10 = ssub.s32 1, %s8
  %s11 = scalar_select 0, %s10, %s8
  $region1: #{tpu_custom_call.1} parent=0
    #allocation2 [shape = 'u8[4096]{0}', space=vmem, size = 0x1000, scoped, tag = 'input window, operand 0, single buffered']
    #allocation3 [shape = 's32[1]{0}', space=sflag, size = 0x4, scoped, tag = 'scoped memory for tpu_custom_call.1']
    #allocation4 [shape = 's32[1]{0}', space=sflag, size = 0x4, scoped, tag = 'scoped memory for tpu_custom_call.1']
    #allocation5 [shape = 'u8[8192]{0}', space=vmem, size = 0x2000, scoped, tag = 'input window, operand 1, single buffered']
    #allocation6 [shape = 's32[1]{0}', space=sflag, size = 0x4, scoped, tag = 'scoped memory for tpu_custom_call.1']
    #allocation7 [shape = 'u8[32768]{0}', space=vmem, size = 0x8000, scoped, tag = 'input window, operand 3, single buffered']
    #allocation8 [shape = 'u8[512]{0}', space=vmem, size = 0x400, scoped, tag = 'input window, operand 4, single buffered']
    #allocation9 [shape = 's32[1]{0}', space=sflag, size = 0x4, scoped, tag = 'scoped memory for tpu_custom_call.1']
    #allocation10 [shape = 'u8[65536]{0}', space=vmem, size = 0x10000, scoped, tag = 'input window, operand 5, single buffered']
    #allocation11 [shape = 'u8[8192]{0}', space=vmem, size = 0x2000, scoped, tag = 'output window, operand 0, single buffered']
    %12 = vsyncpa [#allocation3], 0
    %13 = vsyncpa [#allocation6], 0
    %14 = vsyncpa [#allocation9], 0
    %15 = vsyncpa [#allocation4], 0
    // Predicated region
    $region2: #{tpu_custom_call.1} parent=1 // pred_check
      _
    $region3: #{tpu_custom_call.1} parent=1 // pred_check_branch
      %17 = sbr.rel (0) target = $region5
    $region4: #{tpu_custom_call.1} parent=1 // pred_region
      %19 = vsyncadd [#allocation3], 0
      %s21 = sshll.u32 %s0, 4
      %s22 = int_to_ptr.hbm [resolvable:$true] %s21
      %s23 = sshll.u32 [#allocation2], 4
      %s24 = int_to_ptr.vmem [resolvable:$true] %s23
      %26 = dma.hbm_to_vmem [thread:$0]  %s22, 128, %s24, [#allocation3]
    $region5: #{tpu_custom_call.1} parent=1 // pred_fallthru
      _
    // Predicated region
    $region6: #{tpu_custom_call.1} parent=1 // pred_check
      _
    $region7: #{tpu_custom_call.1} parent=1 // pred_check_branch
      %28 = sbr.rel (0) target = $region9
    $region8: #{tpu_custom_call.1} parent=1 // pred_region
      %30 = vsyncadd [#allocation6], 0
      %s31 = sshll.u32 %s1, 4
      %s32 = int_to_ptr.hbm [resolvable:$true] %s31
      %s33 = sshll.u32 [#allocation5], 4
      %s34 = int_to_ptr.vmem [resolvable:$true] %s33
      %39 = dma.hbm_to_vmem [thread:$0]  %s32, 256, %s34, [#allocation6], 64, 64, 4
    $region9: #{tpu_custom_call.1} parent=1 // pred_fallthru
      _
    // Predicated region
    $region10: #{tpu_custom_call.1} parent=1 // pred_check
      _
    $region11: #{tpu_custom_call.1} parent=1 // pred_check_branch
      %41 = sbr.rel (0) target = $region13
    $region12: #{tpu_custom_call.1} parent=1 // pred_region
      _
    $region13: #{tpu_custom_call.1} parent=1 // pred_fallthru
      _
    // Predicated region
    $region14: #{tpu_custom_call.1} parent=1 // pred_check
      _
    $region15: #{tpu_custom_call.1} parent=1 // pred_check_branch
      %43 = sbr.rel (0) target = $region17
    $region16: #{tpu_custom_call.1} parent=1 // pred_region
      %45 = vsyncadd [#allocation6], 0
      %s46 = sshll.u32 %s3, 4
      %s47 = int_to_ptr.hbm [resolvable:$true] %s46
      %s48 = sshll.u32 [#allocation7], 4
      %s49 = int_to_ptr.vmem [resolvable:$true] %s48
      %54 = dma.hbm_to_vmem [thread:$0]  %s47, 1024, %s49, [#allocation6], 64, 64, 4
    $region17: #{tpu_custom_call.1} parent=1 // pred_fallthru
      _
    // Predicated region
    $region18: #{tpu_custom_call.1} parent=1 // pred_check
      _
    $region19: #{tpu_custom_call.1} parent=1 // pred_check_branch
      %56 = sbr.rel (0) target = $region21
    $region20: #{tpu_custom_call.1} parent=1 // pred_region
      %58 = vsyncadd [#allocation9], 0
      %s60 = sshll.u32 %s4, 4
      %s61 = int_to_ptr.hbm [resolvable:$true] %s60
      %s62 = sshll.u32 [#allocation8], 4
      %s63 = int_to_ptr.vmem [resolvable:$true] %s62
      %65 = dma.hbm_to_vmem [thread:$0]  %s61, 16, %s63, [#allocation9]
    $region21: #{tpu_custom_call.1} parent=1 // pred_fallthru
      _
    // Predicated region
    $region22: #{tpu_custom_call.1} parent=1 // pred_check
      _
    $region23: #{tpu_custom_call.1} parent=1 // pred_check_branch
      %67 = sbr.rel (0) target = $region25
    $region24: #{tpu_custom_call.1} parent=1 // pred_region
      %69 = vsyncadd [#allocation9], 0
      %s70 = sshll.u32 %s5, 4
      %s71 = int_to_ptr.hbm [resolvable:$true] %s70
      %s72 = sshll.u32 [#allocation10], 4
      %s73 = int_to_ptr.vmem [resolvable:$true] %s72
      %78 = dma.hbm_to_vmem [thread:$0]  %s71, 2048, %s73, [#allocation9], 128, 128, 8
    $region25: #{tpu_custom_call.1} parent=1 // pred_fallthru
      _
    // Predicated region
    $region26: #{tpu_custom_call.1} parent=1 // pred_check
      _
    $region27: #{tpu_custom_call.1} parent=1 // pred_check_branch
      %80 = sbr.rel (0) target = $region29
    $region28: #{tpu_custom_call.1} parent=1 // pred_region
      _
    $region29: #{tpu_custom_call.1} parent=1 // pred_fallthru
      _
    // Predicated region
    $region30: #{tpu_custom_call.1} parent=1 // pred_check
      _
    $region31: #{tpu_custom_call.1} parent=1 // pred_check_branch
      %82 = sbr.rel (0) target = $region33
    $region32: #{tpu_custom_call.1} parent=1 // pred_region
      %84 = dma.done [#allocation3], 128
    $region33: #{tpu_custom_call.1} parent=1 // pred_fallthru
      _
    // Predicated region
    $region34: #{tpu_custom_call.1} parent=1 // pred_check
      _
    $region35: #{tpu_custom_call.1} parent=1 // pred_check_branch
      %86 = sbr.rel (0) target = $region37
    $region36: #{tpu_custom_call.1} parent=1 // pred_region
      %88 = dma.done [#allocation6], 256
    $region37: #{tpu_custom_call.1} parent=1 // pred_fallthru
      _
    // Predicated region
    $region38: #{tpu_custom_call.1} parent=1 // pred_check
      _
    $region39: #{tpu_custom_call.1} parent=1 // pred_check_branch
      %90 = sbr.rel (0) target = $region41
    $region40: #{tpu_custom_call.1} parent=1 // pred_region
      %92 = dma.done [#allocation6], 1024
    $region41: #{tpu_custom_call.1} parent=1 // pred_fallthru
      _
    // Predicated region
    $region42: #{tpu_custom_call.1} parent=1 // pred_check
      _
    $region43: #{tpu_custom_call.1} parent=1 // pred_check_branch
      %94 = sbr.rel (0) target = $region45
    $region44: #{tpu_custom_call.1} parent=1 // pred_region
      %96 = dma.done [#allocation9], 16
    $region45: #{tpu_custom_call.1} parent=1 // pred_fallthru
      _
    // Predicated region
    $region46: #{tpu_custom_call.1} parent=1 // pred_check
      _
    $region47: #{tpu_custom_call.1} parent=1 // pred_check_branch
      %98 = sbr.rel (0) target = $region49
    $region48: #{tpu_custom_call.1} parent=1 // pred_region
      %100 = dma.done [#allocation9], 2048
    $region49: #{tpu_custom_call.1} parent=1 // pred_fallthru
      _
    %v102 = vld [vmem:[#allocation2] sm:$0xff]
    %v103 = vpack.c.bf16 %v102, %v102
    %v104 = vld [vmem:[#allocation5] sm:$0xf]
    %v105 = vld [vmem:[#allocation5 + $0x4] sm:$0xf]
    %v106 = vld [vmem:[#allocation5 + $0x8] sm:$0xf]
    %v107 = vld [vmem:[#allocation5 + $0xc] sm:$0xf]
    %v108 = vld [vmem:[%s2] sm:$0x1]
    %v110 = vperm.slane %v108, 0
    %v116 = vunpack.c.l.b16 %v104
    %v117 = vunpack.c.l.b16 %v105
    %v118 = vunpack.c.l.b16 %v106
    %v119 = vunpack.c.l.b16 %v107
    %v120 = vpack.c.b16 %v117, %v116
    %v121 = vpack.c.b16 %v119, %v118
    %vm124 = vcmask 261120
    %v126 = vsel %vm124, %v103, 0
    %128 = vmatpush.bf16.msra.mxu0 0
    %129 = vmatpush.bf16.msra.mxu0 0
    %130 = vmatpush.bf16.msra.mxu0 0
    %131 = vmatpush.bf16.msra.mxu0 0
    %132 = vmatpush.bf16.msra.mxu0 0
    %133 = vmatpush.bf16.msra.mxu0 0
    %134 = vmatpush.bf16.msra.mxu0 %v121
    %135 = vmatpush.bf16.msra.mxu0 %v120
    %136 = vmatmul.bf16.gmra.mxu0 %v126
    %v137 = vpop.f32.mrf.mxu0
    %v138 = vadd.f32 %v110, %v137
    %v139 = vpop.f32.mrf.mxu0
    %140 = vdwg.mxu0
    %v141 = vmax.f32 %v138, 0.0
    %v142 = vpack.c.bf16 %v141, %v141
    %v143 = vld [vmem:[#allocation7] sm:$0xf]
    %v144 = vld [vmem:[#allocation7 + $0x4] sm:$0xf]
    %v145 = vld [vmem:[#allocation7 + $0x8] sm:$0xf]
    %v146 = vld [vmem:[#allocation7 + $0xc] sm:$0xf]
    %v147 = vld [vmem:[#allocation7 + $0x10] sm:$0xf]
    %v148 = vld [vmem:[#allocation7 + $0x14] sm:$0xf]
    %v149 = vld [vmem:[#allocation7 + $0x18] sm:$0xf]
    %v150 = vld [vmem:[#allocation7 + $0x1c] sm:$0xf]
    %v151 = vld [vmem:[#allocation7 + $0x20] sm:$0xf]
    %v152 = vld [vmem:[#allocation7 + $0x24] sm:$0xf]
    %v153 = vld [vmem:[#allocation7 + $0x28] sm:$0xf]
    %v154 = vld [vmem:[#allocation7 + $0x2c] sm:$0xf]
    %v155 = vld [vmem:[#allocation7 + $0x30] sm:$0xf]
    %v156 = vld [vmem:[#allocation7 + $0x34] sm:$0xf]
    %v157 = vld [vmem:[#allocation7 + $0x38] sm:$0xf]
    %v158 = vld [vmem:[#allocation7 + $0x3c] sm:$0xf]
    %v159 = vld [vmem:[#allocation8] sm:$0x1]
    %v161 = vperm.slane %v159, 0
    %v179 = vunpack.c.l.b16 %v143
    %v180 = vunpack.c.l.b16 %v144
    %v181 = vunpack.c.l.b16 %v145
    %v182 = vunpack.c.l.b16 %v146
    %v183 = vunpack.c.l.b16 %v147
    %v184 = vunpack.c.l.b16 %v148
    %v185 = vunpack.c.l.b16 %v149
    %v186 = vunpack.c.l.b16 %v150
    %v187 = vunpack.c.l.b16 %v151
    %v188 = vunpack.c.l.b16 %v152
    %v189 = vunpack.c.l.b16 %v153
    %v190 = vunpack.c.l.b16 %v154
    %v191 = vunpack.c.l.b16 %v155
    %v192 = vunpack.c.l.b16 %v156
    %v193 = vunpack.c.l.b16 %v157
    %v194 = vunpack.c.l.b16 %v158
    %v195 = vpack.c.b16 %v180, %v179
    %v196 = vpack.c.b16 %v182, %v181
    %v197 = vpack.c.b16 %v184, %v183
    %v198 = vpack.c.b16 %v186, %v185
    %v199 = vpack.c.b16 %v188, %v187
    %v200 = vpack.c.b16 %v190, %v189
    %v201 = vpack.c.b16 %v192, %v191
    %v202 = vpack.c.b16 %v194, %v193
    %211 = vmatpush.bf16.msra.mxu0 %v202
    %212 = vmatpush.bf16.msra.mxu0 %v201
    %213 = vmatpush.bf16.msra.mxu0 %v200
    %214 = vmatpush.bf16.msra.mxu0 %v199
    %215 = vmatpush.bf16.msra.mxu0 %v198
    %216 = vmatpush.bf16.msra.mxu0 %v197
    %217 = vmatpush.bf16.msra.mxu0 %v196
    %218 = vmatpush.bf16.msra.mxu0 %v195
    %219 = vmatmul.bf16.gmra.mxu0 %v142
    %v220 = vpop.f32.mrf.mxu0
    %v221 = vadd.f32 %v161, %v220
    %v222 = vpop.f32.mrf.mxu0
    %223 = vdwg.mxu0
    %v224 = vmax.f32 %v221, 0.0
    %v225 = vpack.c.bf16 %v224, %v224
    %v226 = vld [vmem:[#allocation10] sm:$0xff]
    %v227 = vld [vmem:[#allocation10 + $0x8] sm:$0xff]
    %v228 = vld [vmem:[#allocation10 + $0x10] sm:$0xff]
    %v229 = vld [vmem:[#allocation10 + $0x18] sm:$0xff]
    %v230 = vld [vmem:[#allocation10 + $0x20] sm:$0xff]
    %v231 = vld [vmem:[#allocation10 + $0x28] sm:$0xff]
    %v232 = vld [vmem:[#allocation10 + $0x30] sm:$0xff]
    %v233 = vld [vmem:[#allocation10 + $0x38] sm:$0xff]
    %v234 = vld [vmem:[#allocation10 + $0x40] sm:$0xff]
    %v235 = vld [vmem:[#allocation10 + $0x48] sm:$0xff]
    %v236 = vld [vmem:[#allocation10 + $0x50] sm:$0xff]
    %v237 = vld [vmem:[#allocation10 + $0x58] sm:$0xff]
    %v238 = vld [vmem:[#allocation10 + $0x60] sm:$0xff]
    %v239 = vld [vmem:[#allocation10 + $0x68] sm:$0xff]
    %v240 = vld [vmem:[#allocation10 + $0x70] sm:$0xff]
    %v241 = vld [vmem:[#allocation10 + $0x78] sm:$0xff]
    %v242 = vld [vmem:[%s6] sm:$0x3]
    %v244 = vperm.slane %v242, 0
    %v245 = vperm.slane %v242, 1
    %v264 = vunpack.c.l.b16 %v226
    %v265 = vunpack.c.h.b16 %v226
    %v266 = vunpack.c.l.b16 %v227
    %v267 = vunpack.c.h.b16 %v227
    %v268 = vunpack.c.l.b16 %v228
    %v269 = vunpack.c.h.b16 %v228
    %v270 = vunpack.c.l.b16 %v229
    %v271 = vunpack.c.h.b16 %v229
    %v272 = vunpack.c.l.b16 %v230
    %v273 = vunpack.c.h.b16 %v230
    %v274 = vunpack.c.l.b16 %v231
    %v275 = vunpack.c.h.b16 %v231
    %v276 = vunpack.c.l.b16 %v232
    %v277 = vunpack.c.h.b16 %v232
    %v278 = vunpack.c.l.b16 %v233
    %v279 = vunpack.c.h.b16 %v233
    %v280 = vunpack.c.l.b16 %v234
    %v281 = vunpack.c.h.b16 %v234
    %v282 = vunpack.c.l.b16 %v235
    %v283 = vunpack.c.h.b16 %v235
    %v284 = vunpack.c.l.b16 %v236
    %v285 = vunpack.c.h.b16 %v236
    %v286 = vunpack.c.l.b16 %v237
    %v287 = vunpack.c.h.b16 %v237
    %v288 = vunpack.c.l.b16 %v238
    %v289 = vunpack.c.h.b16 %v238
    %v290 = vunpack.c.l.b16 %v239
    %v291 = vunpack.c.h.b16 %v239
    %v292 = vunpack.c.l.b16 %v240
    %v293 = vunpack.c.h.b16 %v240
    %v294 = vunpack.c.l.b16 %v241
    %v295 = vunpack.c.h.b16 %v241
    %v296 = vpack.c.b16 %v266, %v264
    %v297 = vpack.c.b16 %v267, %v265
    %v298 = vpack.c.b16 %v270, %v268
    %v299 = vpack.c.b16 %v271, %v269
    %v300 = vpack.c.b16 %v274, %v272
    %v301 = vpack.c.b16 %v275, %v273
    %v302 = vpack.c.b16 %v278, %v276
    %v303 = vpack.c.b16 %v279, %v277
    %v304 = vpack.c.b16 %v282, %v280
    %v305 = vpack.c.b16 %v283, %v281
    %v306 = vpack.c.b16 %v286, %v284
    %v307 = vpack.c.b16 %v287, %v285
    %v308 = vpack.c.b16 %v290, %v288
    %v309 = vpack.c.b16 %v291, %v289
    %v310 = vpack.c.b16 %v294, %v292
    %v311 = vpack.c.b16 %v295, %v293
    %328 = vmatpush.bf16.msra.mxu0 %v310
    %329 = vmatpush.bf16.msra.mxu0 %v308
    %330 = vmatpush.bf16.msra.mxu0 %v306
    %331 = vmatpush.bf16.msra.mxu0 %v304
    %332 = vmatpush.bf16.msra.mxu0 %v302
    %333 = vmatpush.bf16.msra.mxu0 %v300
    %334 = vmatpush.bf16.msra.mxu0 %v298
    %335 = vmatpush.bf16.msra.mxu0 %v296
    %336 = vmatmul.bf16.gmra.mxu0 %v225
    %v337 = vpop.f32.mrf.mxu0
    %v338 = vadd.f32 %v244, %v337
    %v339 = vpop.f32.mrf.mxu0
    %340 = vdwg.mxu0
    %341 = vmatpush.bf16.msra.mxu0 %v311
    %342 = vmatpush.bf16.msra.mxu0 %v309
    %343 = vmatpush.bf16.msra.mxu0 %v307
    %344 = vmatpush.bf16.msra.mxu0 %v305
    %345 = vmatpush.bf16.msra.mxu0 %v303
    %346 = vmatpush.bf16.msra.mxu0 %v301
    %347 = vmatpush.bf16.msra.mxu0 %v299
    %348 = vmatpush.bf16.msra.mxu0 %v297
    %349 = vmatmul.bf16.gmra.mxu0 %v225
    %v350 = vpop.f32.mrf.mxu0
    %v351 = vadd.f32 %v245, %v350
    %v352 = vpop.f32.mrf.mxu0
    %353 = vdwg.mxu0
    %v354 = vmul.f32 %v338, 0.5
    %v355 = vmul.f32 %v351, 0.5
    %v356 = vtanh.pop %v354
    %v357 = vtanh.pop %v355
    %v358 = vmul.f32 %v356, 0.5
    %v359 = vmul.f32 %v357, 0.5
    %v360 = vadd.f32 %v358, 0.5
    %v361 = vadd.f32 %v359, 0.5
    %362 = vst [vmem:[#allocation11] sm:$0xff] %v360
    %363 = vst [vmem:[#allocation11 + $0x8] sm:$0xff] %v361
    // Predicated region
    $region50: #{tpu_custom_call.1} parent=1 // pred_check
      _
    $region51: #{tpu_custom_call.1} parent=1 // pred_check_branch
      %365 = sbr.rel (0) target = $region53
    $region52: #{tpu_custom_call.1} parent=1 // pred_region
      %367 = vsyncadd [#allocation4], 0
      %s369 = sshll.u32 [#allocation11], 4
      %s370 = int_to_ptr.vmem [resolvable:$true] %s369
      %s371 = sshll.u32 %s7, 4
      %s372 = int_to_ptr.hbm [resolvable:$true] %s371
      %374 = dma.vmem_to_hbm [thread:$0]  %s370, 256, %s372, [#allocation4]
    $region53: #{tpu_custom_call.1} parent=1 // pred_fallthru
      _
    // Predicated region
    $region54: #{tpu_custom_call.1} parent=1 // pred_check
      _
    $region55: #{tpu_custom_call.1} parent=1 // pred_check_branch
      %376 = sbr.rel (0) target = $region57
    $region56: #{tpu_custom_call.1} parent=1 // pred_region
      %378 = dma.done [#allocation4], 256
    $region57: #{tpu_custom_call.1} parent=1 // pred_fallthru
      _
    %379 = vsyncpa [#allocation3], 1
    %380 = vsyncpa [#allocation6], 1
    %381 = vsyncpa [#allocation9], 1
    %382 = vsyncpa [#allocation4], 1

</llo_original>
